<compile_context>
chip_gen: v5e
topology: v5e:2x2
jax: 0.10.0
libtpu: 0.0.40
codegen_flags: <defaults>
</compile_context>

<pallas_src>
import functools
import itertools

import numpy as np
import jax
import jax.numpy as jnp
from jax.experimental import pallas as pl
from jax.experimental.pallas import tpu as pltpu

NUM_FRAMES = 36
NUM_QUERIES = 36
NUM_CLASSES = 42


# ----------------------------- Pallas kernel ---------------------------------

def _cost_kernel(logits_ref, boxes_ref, onehot_ref, tgt_boxes_ref, cost_ref,
                 *, w_class, w_bbox, w_giou):
    logits = logits_ref[...].astype(jnp.float32)     # (bs, F, C)
    ob = boxes_ref[...].astype(jnp.float32)          # (4, bs, F) component-major
    onehot = onehot_ref[...].astype(jnp.float32)     # (T, F, C)  (bf16 in HBM, exact 0/1)
    tb = tgt_boxes_ref[...].astype(jnp.float32)      # (4, T, F)  component-major

    f_dim = logits.shape[1]

    # ---- classification cost, vectorized over T, deferred softmax divide -------
    z = logits - jnp.max(logits, axis=-1, keepdims=True)
    e = jnp.exp(z)                                   # (bs, F, C)
    denom = jnp.sum(e, axis=-1)                      # (bs, F)
    # one-hot selects exactly one class per (t, f): contraction on e is exact.
    e_sel = jnp.sum(e[:, None, :, :] * onehot[None, :, :, :], axis=-1)   # (bs, T, F)
    sel = e_sel / denom[:, None, :]                  # exact divide == prob[b,f,id[t,f]]
    c_class = -jnp.mean(sel, axis=-1)                # (bs, T)

    # ---- box components: free leading-dim slices (component-major layout) ------
    ocx, ocy, ow, oh = ob[0], ob[1], ob[2], ob[3]    # (bs, F)
    tcx, tcy, tw, th = tb[0], tb[1], tb[2], tb[3]    # (T, F)

    ox0, oy0 = ocx - 0.5 * ow, ocy - 0.5 * oh
    ox1, oy1 = ocx + 0.5 * ow, ocy + 0.5 * oh
    tx0, ty0 = tcx - 0.5 * tw, tcy - 0.5 * th
    tx1, ty1 = tcx + 0.5 * tw, tcy + 0.5 * th
    area_o = (ox1 - ox0) * (oy1 - oy0)               # (bs, F)
    area_t = (tx1 - tx0) * (ty1 - ty0)               # (T, F)

    def bt(o, t):  # broadcast an output term and a target term to (bs, T, F)
        return o[:, None, :], t[None, :, :]

    # ---- L1 bbox cost: single fused reduction over 4 components and F frames ---
    l1 = (jnp.abs(ocx[:, None, :] - tcx[None, :, :])
          + jnp.abs(ocy[:, None, :] - tcy[None, :, :])
          + jnp.abs(ow[:, None, :] - tw[None, :, :])
          + jnp.abs(oh[:, None, :] - th[None, :, :]))        # (bs, T, F)
    c_bbox = jnp.sum(l1, axis=-1) * (1.0 / (4.0 * f_dim))    # (bs, T)

    # ---- GIoU cost, vectorized over T ------------------------------------------
    ox0b, tx0b = bt(ox0, tx0)
    oy0b, ty0b = bt(oy0, ty0)
    ox1b, tx1b = bt(ox1, tx1)
    oy1b, ty1b = bt(oy1, ty1)

    inter_w = jnp.maximum(jnp.minimum(ox1b, tx1b) - jnp.maximum(ox0b, tx0b), 0.0)
    inter_h = jnp.maximum(jnp.minimum(oy1b, ty1b) - jnp.maximum(oy0b, ty0b), 0.0)
    inter = inter_w * inter_h                                 # (bs, T, F)
    union = area_o[:, None, :] + area_t[None, :, :] - inter
    iou = inter / union        # same degenerate-box behavior as the reference
    enc_w = jnp.maximum(jnp.maximum(ox1b, tx1b) - jnp.minimum(ox0b, tx0b), 0.0)
    enc_h = jnp.maximum(jnp.maximum(oy1b, ty1b) - jnp.minimum(oy0b, ty0b), 0.0)
    enc = enc_w * enc_h
    giou = iou - (enc - union) / enc                          # (bs, T, F)
    c_giou = -jnp.mean(giou, axis=-1)                         # (bs, T)

    # ---- single lane-dense store of the whole output ----------------------------
    cost_ref[...] = w_class * c_class + w_bbox * c_bbox + w_giou * c_giou


def compute_cost_matrix(pred_logits, pred_boxes_cm, tgt_onehot, tgt_boxes_cm,
                        cost_class=1.0, cost_bbox=1.0, cost_giou=1.0):
    """pred_logits: (bs, F, C); pred_boxes_cm: (4, bs, F);
       tgt_onehot: (T, F, C) (any float dtype); tgt_boxes_cm: (4, T, F).
       Returns (bs, T) f32 cost. Gridless single kernel invocation."""
    bs = pred_logits.shape[0]
    T = tgt_onehot.shape[0]
    assert T >= 1, "compute_cost_matrix requires at least one target"
    kernel = functools.partial(_cost_kernel,
                               w_class=float(cost_class),
                               w_bbox=float(cost_bbox),
                               w_giou=float(cost_giou))
    return pl.pallas_call(
        kernel,
        out_shape=jax.ShapeDtypeStruct((bs, T), jnp.float32),
        in_specs=[pl.BlockSpec(memory_space=pltpu.MemorySpace.VMEM)] * 4,
        out_specs=pl.BlockSpec(memory_space=pltpu.MemorySpace.VMEM),
    )(pred_logits, pred_boxes_cm, tgt_onehot, tgt_boxes_cm)


# ------------------------ host-side glue (assignment) ------------------------

def _linear_sum_assignment(cost):
    """Exact brute-force Hungarian solve for tiny matrices (matches scipy semantics)."""
    cost = np.asarray(cost, dtype=np.float64)
    n, m = cost.shape
    transposed = False
    if n > m:
        cost = cost.T
        n, m = m, n
        transposed = True
    best_total, best_cols = None, None
    for cols in itertools.permutations(range(m), n):
        total = cost[np.arange(n), list(cols)].sum()
        if best_total is None or total < best_total:
            best_total, best_cols = total, cols
    rows = np.arange(n)
    cols = np.array(best_cols, dtype=np.int64)
    if transposed:
        rows, cols = cols, rows
        order = np.argsort(rows)
        rows, cols = rows[order], cols[order]
    return rows, cols


class HungarianMatcherPallas:
    def __init__(self, num_frames=36, cost_class=1.0, cost_bbox=1.0, cost_giou=1.0):
        assert cost_class != 0 or cost_bbox != 0 or cost_giou != 0, "all costs cant be 0"
        self.num_frames = num_frames
        self.cost_class = cost_class
        self.cost_bbox = cost_bbox
        self.cost_giou = cost_giou

    def forward(self, outputs, targets):
        num_queries = NUM_QUERIES
        pred_logits = outputs['pred_logits'].reshape(-1, num_queries, NUM_CLASSES)
        pred_boxes = outputs['pred_boxes'].reshape(-1, num_queries, 4)
        bs = pred_logits.shape[0]

        tgt_ids = targets[0]['labels']
        tgt_bbox = targets[0]['boxes']
        tgt_valid = targets[0]['valid']
        num_out = 1
        num_tgt = int(tgt_ids.shape[0]) // self.num_frames

        if num_tgt == 0:
            # No targets: kernel output would be unwritten; return empty match.
            return [(jnp.array([], dtype=jnp.int32), jnp.array([], dtype=jnp.int32))]

        # bf16 one-hot: exact for 0/1 data, halves the largest input's HBM traffic.
        onehot = jax.nn.one_hot(tgt_ids.reshape(num_tgt, self.num_frames),
                                NUM_CLASSES, dtype=jnp.bfloat16)              # (T, F, C)
        # component-major box layouts (wrapper-side transpose only)
        pred_boxes_cm = jnp.transpose(pred_boxes, (2, 0, 1))                  # (4, bs, F)
        tgt_boxes_cm = jnp.transpose(tgt_bbox.reshape(num_tgt, self.num_frames, 4),
                                     (2, 0, 1))                               # (4, T, F)

        cost = compute_cost_matrix(pred_logits, pred_boxes_cm, onehot, tgt_boxes_cm,
                                   self.cost_class, self.cost_bbox, self.cost_giou)
        cost = cost.reshape(bs, num_out, num_tgt)
        cost_values = jnp.max(cost, axis=1)        # (bs, num_tgt)
        cost_indices = jnp.argmax(cost, axis=1)    # (bs, num_tgt), all zeros (num_out == 1)

        # TODO(synk): scipy.optimize.linear_sum_assignment and the dynamic nonzero()
        #             index construction have no Pallas equivalent; solved host-side
        #             (exact brute force on the tiny bs x num_tgt matrix).
        cost_values_np = np.asarray(jax.device_get(cost_values))
        out_i, tgt_i = _linear_sum_assignment(cost_values_np)

        tgt_valid_split = np.asarray(jax.device_get(tgt_valid)).reshape(num_tgt, self.num_frames)
        ci0 = np.asarray(jax.device_get(cost_indices))[0]

        index_i_list, index_j_list = [], []
        for j in range(len(out_i)):
            valid_ind = np.nonzero(tgt_valid_split[tgt_i[j]])[0]
            index_i_list.append(valid_ind * num_out + int(ci0[j]) + int(out_i[j]) * num_queries)
            index_j_list.append(valid_ind + int(tgt_i[j]) * self.num_frames)

        if not index_i_list or not index_j_list:
            return [(jnp.array([], dtype=jnp.int32), jnp.array([], dtype=jnp.int32))]
        index_i = jnp.asarray(np.concatenate(index_i_list), dtype=jnp.int32)
        index_j = jnp.asarray(np.concatenate(index_j_list), dtype=jnp.int32)
        return [(index_i, index_j)]


# ------------------------------ pure-JAX reference ---------------------------

def _box_cxcywh_to_xyxy(b):
    cx, cy, w, h = b[..., 0], b[..., 1], b[..., 2], b[..., 3]
    return jnp.stack([cx - 0.5 * w, cy - 0.5 * h, cx + 0.5 * w, cy + 0.5 * h], axis=-1)


def _multi_giou(b1, b2):
    lt = jnp.maximum(b1[..., :2], b2[..., :2])
    rb = jnp.minimum(b1[..., 2:], b2[..., 2:])
    wh = jnp.clip(rb - lt, 0)
    inter = wh[..., 0] * wh[..., 1]
    a1 = (b1[..., 2] - b1[..., 0]) * (b1[..., 3] - b1[..., 1])
    a2 = (b2[..., 2] - b2[..., 0]) * (b2[..., 3] - b2[..., 1])
    union = a1 + a2 - inter
    iou = inter / union
    lt = jnp.minimum(b1[..., :2], b2[..., :2])
    rb = jnp.maximum(b1[..., 2:], b2[..., 2:])
    wh = jnp.clip(rb - lt, 0)
    area = wh[..., 0] * wh[..., 1]
    return iou - (area - union) / area


def reference_cost(pred_logits, pred_boxes, labels, tgt_boxes, w_c, w_b, w_g):
    bs = pred_logits.shape[0]
    T = labels.shape[0] // NUM_FRAMES
    ids = labels.reshape(T, NUM_FRAMES)
    tb = tgt_boxes.reshape(T, NUM_FRAMES, 4)
    rows = []
    for i in range(bs):
        prob = jax.nn.softmax(pred_logits[i].astype(jnp.float32), axis=-1)   # (F, C)
        sel = prob[jnp.arange(NUM_FRAMES)[None, :], ids]                      # (T, F)
        class_cost = -sel.mean(-1)
        ob = pred_boxes[i]
        bbox_cost = jnp.abs(ob[None, :, :] - tb).mean((-1, -2))
        giou = _multi_giou(_box_cxcywh_to_xyxy(ob)[None], _box_cxcywh_to_xyxy(tb))
        rows.append(w_c * class_cost + w_b * bbox_cost + w_g * (-giou.mean(-1)))
    return jnp.stack(rows)


# ----------------------------------- main -------------------------------------

if __name__ == "__main__":
    key = jax.random.PRNGKey(0)
    k1, k2, k3, k4, k5, k6 = jax.random.split(key, 6)

    bs = 2
    num_tgt = 2

    pred_logits = jax.random.normal(k1, (bs, NUM_QUERIES, NUM_CLASSES), dtype=jnp.float32)
    p_cxcy = jax.random.uniform(k2, (bs, NUM_QUERIES, 2), minval=0.25, maxval=0.75)
    p_wh = jax.random.uniform(k3, (bs, NUM_QUERIES, 2), minval=0.05, maxval=0.30)
    pred_boxes = jnp.concatenate([p_cxcy, p_wh], axis=-1)

    labels = jax.random.randint(k4, (num_tgt * NUM_FRAMES,), 0, NUM_CLASSES)
    t_cxcy = jax.random.uniform(k5, (num_tgt * NUM_FRAMES, 2), minval=0.25, maxval=0.75)
    t_wh = jax.random.uniform(k6, (num_tgt * NUM_FRAMES, 2), minval=0.05, maxval=0.30)
    tgt_boxes = jnp.concatenate([t_cxcy, t_wh], axis=-1)
    valid = jnp.ones((num_tgt * NUM_FRAMES,), dtype=jnp.int32).at[0::7].set(0)

    outputs = {'pred_logits': pred_logits, 'pred_boxes': pred_boxes}
    targets = [{'labels': labels, 'boxes': tgt_boxes, 'valid': valid}]

    matcher = HungarianMatcherPallas(num_frames=NUM_FRAMES,
                                     cost_class=1.0, cost_bbox=1.0, cost_giou=1.0)
    indices = matcher.forward(outputs, targets)
    jax.block_until_ready(indices[0][0])
    jax.block_until_ready(indices[0][1])

    # verify the Pallas cost matrix against a pure-JAX reference
    onehot = jax.nn.one_hot(labels.reshape(num_tgt, NUM_FRAMES), NUM_CLASSES, dtype=jnp.bfloat16)
    cost_kernel = compute_cost_matrix(
        pred_logits,
        jnp.transpose(pred_boxes, (2, 0, 1)),
        onehot,
        jnp.transpose(tgt_boxes.reshape(num_tgt, NUM_FRAMES, 4), (2, 0, 1)),
        1.0, 1.0, 1.0)
    cost_ref = reference_cost(pred_logits, pred_boxes, labels, tgt_boxes, 1.0, 1.0, 1.0)
    np.testing.assert_allclose(np.asarray(jax.block_until_ready(cost_kernel)),
                               np.asarray(cost_ref), rtol=1e-4, atol=1e-4)

    print("KERNEL_OK")
</pallas_src>

<mosaic_0001>
module attributes {stable_mosaic.version = 11 : i64} {
  func.func @_cost_kernel(%arg0: memref<2x36x42xf32, #tpu.memory_space<vmem>>, %arg1: memref<4x2x36xf32, #tpu.memory_space<vmem>>, %arg2: memref<2x36x42xbf16, #tpu.memory_space<vmem>>, %arg3: memref<4x2x36xf32, #tpu.memory_space<vmem>>, %arg4: memref<2x2xf32, #tpu.memory_space<vmem>>) attributes {dimension_semantics = [], scalar_prefetch = 0 : i64, scratch_operands = 0 : i64, tpu.core_type = #tpu.core_type<tc>} {
    %c0 = arith.constant 0 : index
    %c0_0 = arith.constant 0 : index
    %c0_1 = arith.constant 0 : index
    %0 = vector.load %arg0[%c0, %c0_0, %c0_1] : memref<2x36x42xf32, #tpu.memory_space<vmem>>, vector<2x36x42xf32>
    %c0_2 = arith.constant 0 : index
    %c0_3 = arith.constant 0 : index
    %c0_4 = arith.constant 0 : index
    %1 = vector.load %arg1[%c0_2, %c0_3, %c0_4] : memref<4x2x36xf32, #tpu.memory_space<vmem>>, vector<4x2x36xf32>
    %c0_5 = arith.constant 0 : index
    %c0_6 = arith.constant 0 : index
    %c0_7 = arith.constant 0 : index
    %2 = vector.load %arg2[%c0_5, %c0_6, %c0_7] : memref<2x36x42xbf16, #tpu.memory_space<vmem>>, vector<2x36x42xbf16>
    %3 = arith.extf %2 : vector<2x36x42xbf16> to vector<2x36x42xf32>
    %c0_8 = arith.constant 0 : index
    %c0_9 = arith.constant 0 : index
    %c0_10 = arith.constant 0 : index
    %4 = vector.load %arg3[%c0_8, %c0_9, %c0_10] : memref<4x2x36xf32, #tpu.memory_space<vmem>>, vector<4x2x36xf32>
    %cst = arith.constant dense<0xFF800000> : vector<2x36xf32>
    %5 = vector.multi_reduction <maximumf>, %0, %cst [2] : vector<2x36x42xf32> to vector<2x36xf32>
    %6 = vector.shape_cast %5 : vector<2x36xf32> to vector<2x36x1xf32>
    %7 = vector.broadcast %6 : vector<2x36x1xf32> to vector<2x36x42xf32>
    %8 = arith.subf %0, %7 : vector<2x36x42xf32>
    %9 = math.exp %8 : vector<2x36x42xf32>
    %cst_11 = arith.constant dense<0.000000e+00> : vector<2x36xf32>
    %10 = vector.multi_reduction <add>, %9, %cst_11 [2] : vector<2x36x42xf32> to vector<2x36xf32>
    %11 = vector.shape_cast %9 : vector<2x36x42xf32> to vector<2x1x36x42xf32>
    %12 = vector.shape_cast %3 : vector<2x36x42xf32> to vector<1x2x36x42xf32>
    %13 = vector.broadcast %11 : vector<2x1x36x42xf32> to vector<2x2x36x42xf32>
    %14 = vector.broadcast %12 : vector<1x2x36x42xf32> to vector<2x2x36x42xf32>
    %15 = arith.mulf %13, %14 : vector<2x2x36x42xf32>
    %cst_12 = arith.constant dense<0.000000e+00> : vector<2x2x36xf32>
    %16 = vector.multi_reduction <add>, %15, %cst_12 [3] : vector<2x2x36x42xf32> to vector<2x2x36xf32>
    %17 = vector.shape_cast %10 : vector<2x36xf32> to vector<2x1x36xf32>
    %18 = vector.broadcast %17 : vector<2x1x36xf32> to vector<2x2x36xf32>
    %19 = arith.divf %16, %18 : vector<2x2x36xf32>
    %cst_13 = arith.constant dense<0.000000e+00> : vector<2x2xf32>
    %20 = vector.multi_reduction <add>, %19, %cst_13 [2] : vector<2x2x36xf32> to vector<2x2xf32>
    %cst_14 = arith.constant 3.600000e+01 : f32
    %21 = vector.broadcast %cst_14 : f32 to vector<2x2xf32>
    %22 = arith.divf %20, %21 : vector<2x2xf32>
    %cst_15 = arith.constant 0.000000e+00 : f32
    %23 = vector.broadcast %cst_15 : f32 to vector<2x2xf32>
    %24 = arith.subf %23, %22 : vector<2x2xf32>
    %25 = vector.extract_strided_slice %1 {offsets = [0, 0, 0], sizes = [1, 2, 36], strides = [1, 1, 1]} : vector<4x2x36xf32> to vector<1x2x36xf32>
    %26 = vector.shape_cast %25 : vector<1x2x36xf32> to vector<2x36xf32>
    %27 = vector.extract_strided_slice %1 {offsets = [1, 0, 0], sizes = [1, 2, 36], strides = [1, 1, 1]} : vector<4x2x36xf32> to vector<1x2x36xf32>
    %28 = vector.shape_cast %27 : vector<1x2x36xf32> to vector<2x36xf32>
    %29 = vector.extract_strided_slice %1 {offsets = [2, 0, 0], sizes = [1, 2, 36], strides = [1, 1, 1]} : vector<4x2x36xf32> to vector<1x2x36xf32>
    %30 = vector.shape_cast %29 : vector<1x2x36xf32> to vector<2x36xf32>
    %31 = vector.extract_strided_slice %1 {offsets = [3, 0, 0], sizes = [1, 2, 36], strides = [1, 1, 1]} : vector<4x2x36xf32> to vector<1x2x36xf32>
    %32 = vector.shape_cast %31 : vector<1x2x36xf32> to vector<2x36xf32>
    %33 = vector.extract_strided_slice %4 {offsets = [0, 0, 0], sizes = [1, 2, 36], strides = [1, 1, 1]} : vector<4x2x36xf32> to vector<1x2x36xf32>
    %34 = vector.shape_cast %33 : vector<1x2x36xf32> to vector<2x36xf32>
    %35 = vector.extract_strided_slice %4 {offsets = [1, 0, 0], sizes = [1, 2, 36], strides = [1, 1, 1]} : vector<4x2x36xf32> to vector<1x2x36xf32>
    %36 = vector.shape_cast %35 : vector<1x2x36xf32> to vector<2x36xf32>
    %37 = vector.extract_strided_slice %4 {offsets = [2, 0, 0], sizes = [1, 2, 36], strides = [1, 1, 1]} : vector<4x2x36xf32> to vector<1x2x36xf32>
    %38 = vector.shape_cast %37 : vector<1x2x36xf32> to vector<2x36xf32>
    %39 = vector.extract_strided_slice %4 {offsets = [3, 0, 0], sizes = [1, 2, 36], strides = [1, 1, 1]} : vector<4x2x36xf32> to vector<1x2x36xf32>
    %40 = vector.shape_cast %39 : vector<1x2x36xf32> to vector<2x36xf32>
    %cst_16 = arith.constant 5.000000e-01 : f32
    %41 = vector.broadcast %cst_16 : f32 to vector<2x36xf32>
    %42 = arith.mulf %41, %30 : vector<2x36xf32>
    %43 = arith.subf %26, %42 : vector<2x36xf32>
    %cst_17 = arith.constant 5.000000e-01 : f32
    %44 = vector.broadcast %cst_17 : f32 to vector<2x36xf32>
    %45 = arith.mulf %44, %32 : vector<2x36xf32>
    %46 = arith.subf %28, %45 : vector<2x36xf32>
    %cst_18 = arith.constant 5.000000e-01 : f32
    %47 = vector.broadcast %cst_18 : f32 to vector<2x36xf32>
    %48 = arith.mulf %47, %30 : vector<2x36xf32>
    %49 = arith.addf %26, %48 : vector<2x36xf32>
    %cst_19 = arith.constant 5.000000e-01 : f32
    %50 = vector.broadcast %cst_19 : f32 to vector<2x36xf32>
    %51 = arith.mulf %50, %32 : vector<2x36xf32>
    %52 = arith.addf %28, %51 : vector<2x36xf32>
    %cst_20 = arith.constant 5.000000e-01 : f32
    %53 = vector.broadcast %cst_20 : f32 to vector<2x36xf32>
    %54 = arith.mulf %53, %38 : vector<2x36xf32>
    %55 = arith.subf %34, %54 : vector<2x36xf32>
    %cst_21 = arith.constant 5.000000e-01 : f32
    %56 = vector.broadcast %cst_21 : f32 to vector<2x36xf32>
    %57 = arith.mulf %56, %40 : vector<2x36xf32>
    %58 = arith.subf %36, %57 : vector<2x36xf32>
    %cst_22 = arith.constant 5.000000e-01 : f32
    %59 = vector.broadcast %cst_22 : f32 to vector<2x36xf32>
    %60 = arith.mulf %59, %38 : vector<2x36xf32>
    %61 = arith.addf %34, %60 : vector<2x36xf32>
    %cst_23 = arith.constant 5.000000e-01 : f32
    %62 = vector.broadcast %cst_23 : f32 to vector<2x36xf32>
    %63 = arith.mulf %62, %40 : vector<2x36xf32>
    %64 = arith.addf %36, %63 : vector<2x36xf32>
    %65 = arith.subf %49, %43 : vector<2x36xf32>
    %66 = arith.subf %52, %46 : vector<2x36xf32>
    %67 = arith.mulf %65, %66 : vector<2x36xf32>
    %68 = arith.subf %61, %55 : vector<2x36xf32>
    %69 = arith.subf %64, %58 : vector<2x36xf32>
    %70 = arith.mulf %68, %69 : vector<2x36xf32>
    %71 = vector.shape_cast %26 : vector<2x36xf32> to vector<2x1x36xf32>
    %72 = vector.shape_cast %34 : vector<2x36xf32> to vector<1x2x36xf32>
    %73 = vector.broadcast %71 : vector<2x1x36xf32> to vector<2x2x36xf32>
    %74 = vector.broadcast %72 : vector<1x2x36xf32> to vector<2x2x36xf32>
    %75 = arith.subf %73, %74 : vector<2x2x36xf32>
    %76 = math.absf %75 : vector<2x2x36xf32>
    %77 = vector.shape_cast %28 : vector<2x36xf32> to vector<2x1x36xf32>
    %78 = vector.shape_cast %36 : vector<2x36xf32> to vector<1x2x36xf32>
    %79 = vector.broadcast %77 : vector<2x1x36xf32> to vector<2x2x36xf32>
    %80 = vector.broadcast %78 : vector<1x2x36xf32> to vector<2x2x36xf32>
    %81 = arith.subf %79, %80 : vector<2x2x36xf32>
    %82 = math.absf %81 : vector<2x2x36xf32>
    %83 = arith.addf %76, %82 : vector<2x2x36xf32>
    %84 = vector.shape_cast %30 : vector<2x36xf32> to vector<2x1x36xf32>
    %85 = vector.shape_cast %38 : vector<2x36xf32> to vector<1x2x36xf32>
    %86 = vector.broadcast %84 : vector<2x1x36xf32> to vector<2x2x36xf32>
    %87 = vector.broadcast %85 : vector<1x2x36xf32> to vector<2x2x36xf32>
    %88 = arith.subf %86, %87 : vector<2x2x36xf32>
    %89 = math.absf %88 : vector<2x2x36xf32>
    %90 = arith.addf %83, %89 : vector<2x2x36xf32>
    %91 = vector.shape_cast %32 : vector<2x36xf32> to vector<2x1x36xf32>
    %92 = vector.shape_cast %40 : vector<2x36xf32> to vector<1x2x36xf32>
    %93 = vector.broadcast %91 : vector<2x1x36xf32> to vector<2x2x36xf32>
    %94 = vector.broadcast %92 : vector<1x2x36xf32> to vector<2x2x36xf32>
    %95 = arith.subf %93, %94 : vector<2x2x36xf32>
    %96 = math.absf %95 : vector<2x2x36xf32>
    %97 = arith.addf %90, %96 : vector<2x2x36xf32>
    %cst_24 = arith.constant dense<0.000000e+00> : vector<2x2xf32>
    %98 = vector.multi_reduction <add>, %97, %cst_24 [2] : vector<2x2x36xf32> to vector<2x2xf32>
    %cst_25 = arith.constant 0.0069444445 : f32
    %99 = vector.broadcast %cst_25 : f32 to vector<2x2xf32>
    %100 = arith.mulf %98, %99 : vector<2x2xf32>
    %101 = vector.shape_cast %43 : vector<2x36xf32> to vector<2x1x36xf32>
    %102 = vector.shape_cast %55 : vector<2x36xf32> to vector<1x2x36xf32>
    %103 = vector.shape_cast %46 : vector<2x36xf32> to vector<2x1x36xf32>
    %104 = vector.shape_cast %58 : vector<2x36xf32> to vector<1x2x36xf32>
    %105 = vector.shape_cast %49 : vector<2x36xf32> to vector<2x1x36xf32>
    %106 = vector.shape_cast %61 : vector<2x36xf32> to vector<1x2x36xf32>
    %107 = vector.shape_cast %52 : vector<2x36xf32> to vector<2x1x36xf32>
    %108 = vector.shape_cast %64 : vector<2x36xf32> to vector<1x2x36xf32>
    %109 = vector.broadcast %105 : vector<2x1x36xf32> to vector<2x2x36xf32>
    %110 = vector.broadcast %106 : vector<1x2x36xf32> to vector<2x2x36xf32>
    %111 = arith.minimumf %109, %110 : vector<2x2x36xf32>
    %112 = vector.broadcast %101 : vector<2x1x36xf32> to vector<2x2x36xf32>
    %113 = vector.broadcast %102 : vector<1x2x36xf32> to vector<2x2x36xf32>
    %114 = arith.maximumf %112, %113 : vector<2x2x36xf32>
    %115 = arith.subf %111, %114 : vector<2x2x36xf32>
    %cst_26 = arith.constant 0.000000e+00 : f32
    %116 = vector.broadcast %cst_26 : f32 to vector<2x2x36xf32>
    %117 = arith.maximumf %115, %116 : vector<2x2x36xf32>
    %118 = vector.broadcast %107 : vector<2x1x36xf32> to vector<2x2x36xf32>
    %119 = vector.broadcast %108 : vector<1x2x36xf32> to vector<2x2x36xf32>
    %120 = arith.minimumf %118, %119 : vector<2x2x36xf32>
    %121 = vector.broadcast %103 : vector<2x1x36xf32> to vector<2x2x36xf32>
    %122 = vector.broadcast %104 : vector<1x2x36xf32> to vector<2x2x36xf32>
    %123 = arith.maximumf %121, %122 : vector<2x2x36xf32>
    %124 = arith.subf %120, %123 : vector<2x2x36xf32>
    %cst_27 = arith.constant 0.000000e+00 : f32
    %125 = vector.broadcast %cst_27 : f32 to vector<2x2x36xf32>
    %126 = arith.maximumf %124, %125 : vector<2x2x36xf32>
    %127 = arith.mulf %117, %126 : vector<2x2x36xf32>
    %128 = vector.shape_cast %67 : vector<2x36xf32> to vector<2x1x36xf32>
    %129 = vector.shape_cast %70 : vector<2x36xf32> to vector<1x2x36xf32>
    %130 = vector.broadcast %128 : vector<2x1x36xf32> to vector<2x2x36xf32>
    %131 = vector.broadcast %129 : vector<1x2x36xf32> to vector<2x2x36xf32>
    %132 = arith.addf %130, %131 : vector<2x2x36xf32>
    %133 = arith.subf %132, %127 : vector<2x2x36xf32>
    %134 = arith.divf %127, %133 : vector<2x2x36xf32>
    %135 = vector.broadcast %105 : vector<2x1x36xf32> to vector<2x2x36xf32>
    %136 = vector.broadcast %106 : vector<1x2x36xf32> to vector<2x2x36xf32>
    %137 = arith.maximumf %135, %136 : vector<2x2x36xf32>
    %138 = vector.broadcast %101 : vector<2x1x36xf32> to vector<2x2x36xf32>
    %139 = vector.broadcast %102 : vector<1x2x36xf32> to vector<2x2x36xf32>
    %140 = arith.minimumf %138, %139 : vector<2x2x36xf32>
    %141 = arith.subf %137, %140 : vector<2x2x36xf32>
    %cst_28 = arith.constant 0.000000e+00 : f32
    %142 = vector.broadcast %cst_28 : f32 to vector<2x2x36xf32>
    %143 = arith.maximumf %141, %142 : vector<2x2x36xf32>
    %144 = vector.broadcast %107 : vector<2x1x36xf32> to vector<2x2x36xf32>
    %145 = vector.broadcast %108 : vector<1x2x36xf32> to vector<2x2x36xf32>
    %146 = arith.maximumf %144, %145 : vector<2x2x36xf32>
    %147 = vector.broadcast %103 : vector<2x1x36xf32> to vector<2x2x36xf32>
    %148 = vector.broadcast %104 : vector<1x2x36xf32> to vector<2x2x36xf32>
    %149 = arith.minimumf %147, %148 : vector<2x2x36xf32>
    %150 = arith.subf %146, %149 : vector<2x2x36xf32>
    %cst_29 = arith.constant 0.000000e+00 : f32
    %151 = vector.broadcast %cst_29 : f32 to vector<2x2x36xf32>
    %152 = arith.maximumf %150, %151 : vector<2x2x36xf32>
    %153 = arith.mulf %143, %152 : vector<2x2x36xf32>
    %154 = arith.subf %153, %133 : vector<2x2x36xf32>
    %155 = arith.divf %154, %153 : vector<2x2x36xf32>
    %156 = arith.subf %134, %155 : vector<2x2x36xf32>
    %cst_30 = arith.constant dense<0.000000e+00> : vector<2x2xf32>
    %157 = vector.multi_reduction <add>, %156, %cst_30 [2] : vector<2x2x36xf32> to vector<2x2xf32>
    %cst_31 = arith.constant 3.600000e+01 : f32
    %158 = vector.broadcast %cst_31 : f32 to vector<2x2xf32>
    %159 = arith.divf %157, %158 : vector<2x2xf32>
    %cst_32 = arith.constant 0.000000e+00 : f32
    %160 = vector.broadcast %cst_32 : f32 to vector<2x2xf32>
    %161 = arith.subf %160, %159 : vector<2x2xf32>
    %cst_33 = arith.constant 1.000000e+00 : f32
    %162 = vector.broadcast %cst_33 : f32 to vector<2x2xf32>
    %163 = arith.mulf %162, %24 : vector<2x2xf32>
    %cst_34 = arith.constant 1.000000e+00 : f32
    %164 = vector.broadcast %cst_34 : f32 to vector<2x2xf32>
    %165 = arith.mulf %164, %100 : vector<2x2xf32>
    %166 = arith.addf %163, %165 : vector<2x2xf32>
    %cst_35 = arith.constant 1.000000e+00 : f32
    %167 = vector.broadcast %cst_35 : f32 to vector<2x2xf32>
    %168 = arith.mulf %167, %161 : vector<2x2xf32>
    %169 = arith.addf %166, %168 : vector<2x2xf32>
    %c0_36 = arith.constant 0 : index
    %c0_37 = arith.constant 0 : index
    %170 = vector.load %arg4[%c0_36, %c0_37] : memref<2x2xf32, #tpu.memory_space<vmem>>, vector<2x2xf32>
    tpu.vector_store %arg4[%c0_36, %c0_37], %169 {strides = array<i32>} : memref<2x2xf32, #tpu.memory_space<vmem>>, vector<2x2xf32>,
    return
  }
}

</mosaic_0001>

<llo_original>
// kernel: tpu_custom_call.1
$region0: #{tpu_custom_call.1}
  #allocation0 [shape = 'u32[]', space=smem, size = 0x4, offset = 0x4, fixed_abs, tag = 'smem constant byte address 0x4 - core index']
  #allocation1 [shape = 'u32[72,128]{1,0:T(1,128)}', space=vmem, size = 0x9000, scoped, tag = 'internal scratch']
  %s0 = inlined_call_operand.vmem [shape: f32[2,36,42], index: 0, kind: input, shape index: {}]
  %s1 = inlined_call_operand.vmem [shape: f32[4,2,36], index: 1, kind: input, shape index: {}]
  %s2 = inlined_call_operand.vmem [shape: bf16[2,36,42], index: 2, kind: input, shape index: {}]
  %s3 = inlined_call_operand.vmem [shape: f32[4,2,36], index: 3, kind: input, shape index: {}]
  %s4 = inlined_call_operand.hbm [shape: f32[2,2], index: 4, kind: output, shape index: {}]
  %s5 = sld [smem:[#allocation0]]
  $region26: #{tpu_custom_call.1} parent=0
    _
  %s7 = ssub.s32 1, %s5
  %s8 = scalar_select 0, %s7, %s5
  $region1: #{tpu_custom_call.1} parent=0
    #allocation2 [shape = 'u8[1024]{0}', space=vmem, size = 0x400, scoped, tag = 'output window, operand 0, single buffered']
    #allocation3 [shape = 's32[1]{0}', space=sflag, size = 0x4, scoped, tag = 'scoped memory for tpu_custom_call.1']
    %9 = vsyncpa [#allocation3], 0
    // Predicated region
    $region2: #{tpu_custom_call.1} parent=1 // pred_check
      _
    $region3: #{tpu_custom_call.1} parent=1 // pred_check_branch
      %11 = sbr.rel (0) target = $region5
    $region4: #{tpu_custom_call.1} parent=1 // pred_region
      _
    $region5: #{tpu_custom_call.1} parent=1 // pred_fallthru
      _
    // Predicated region
    $region6: #{tpu_custom_call.1} parent=1 // pred_check
      _
    $region7: #{tpu_custom_call.1} parent=1 // pred_check_branch
      %13 = sbr.rel (0) target = $region9
    $region8: #{tpu_custom_call.1} parent=1 // pred_region
      _
    $region9: #{tpu_custom_call.1} parent=1 // pred_fallthru
      _
    // Predicated region
    $region10: #{tpu_custom_call.1} parent=1 // pred_check
      _
    $region11: #{tpu_custom_call.1} parent=1 // pred_check_branch
      %15 = sbr.rel (0) target = $region13
    $region12: #{tpu_custom_call.1} parent=1 // pred_region
      _
    $region13: #{tpu_custom_call.1} parent=1 // pred_fallthru
      _
    // Predicated region
    $region14: #{tpu_custom_call.1} parent=1 // pred_check
      _
    $region15: #{tpu_custom_call.1} parent=1 // pred_check_branch
      %17 = sbr.rel (0) target = $region17
    $region16: #{tpu_custom_call.1} parent=1 // pred_region
      _
    $region17: #{tpu_custom_call.1} parent=1 // pred_fallthru
      _
    %v18 = vld [vmem:[%s0] sm:$0xff]
    %v19 = vld [vmem:[%s0 + $0x8] sm:$0xff]
    %v20 = vld [vmem:[%s0 + $0x10] sm:$0xff]
    %v21 = vld [vmem:[%s0 + $0x18] sm:$0xff]
    %v22 = vld [vmem:[%s0 + $0x20] sm:$0xf]
    %v23 = vld [vmem:[%s0 + $0x28] sm:$0xff]
    %v24 = vld [vmem:[%s0 + $0x30] sm:$0xff]
    %v25 = vld [vmem:[%s0 + $0x38] sm:$0xff]
    %v26 = vld [vmem:[%s0 + $0x40] sm:$0xff]
    %v27 = vld [vmem:[%s0 + $0x48] sm:$0xf]
    %v28 = vld [vmem:[%s1] sm:$0x3]
    %v29 = vld [vmem:[%s1 + $0x2] sm:$0x3]
    %v30 = vld [vmem:[%s1 + $0x4] sm:$0x3]
    %v31 = vld [vmem:[%s1 + $0x6] sm:$0x3]
    %v32 = vld [vmem:[%s2] sm:$0xf]
    %v33 = vld [vmem:[%s2 + $0x4] sm:$0xf]
    %v34 = vld [vmem:[%s2 + $0x8] sm:$0xf]
    %v35 = vld [vmem:[%s2 + $0xc] sm:$0xf]
    %v36 = vld [vmem:[%s2 + $0x10] sm:$0x3]
    %v37 = vld [vmem:[%s2 + $0x14] sm:$0xf]
    %v38 = vld [vmem:[%s2 + $0x18] sm:$0xf]
    %v39 = vld [vmem:[%s2 + $0x1c] sm:$0xf]
    %v40 = vld [vmem:[%s2 + $0x20] sm:$0xf]
    %v41 = vld [vmem:[%s2 + $0x24] sm:$0x3]
    %v42 = vunpack.c.l.bf16 %v32
    %v43 = vunpack.c.l.bf16 %v33
    %v44 = vunpack.c.l.bf16 %v34
    %v45 = vunpack.c.l.bf16 %v35
    %v46 = vunpack.c.l.bf16 %v36
    %v47 = vunpack.c.l.bf16 %v37
    %v48 = vunpack.c.l.bf16 %v38
    %v49 = vunpack.c.l.bf16 %v39
    %v50 = vunpack.c.l.bf16 %v40
    %v51 = vunpack.c.l.bf16 %v41
    %v52 = vld [vmem:[%s3] sm:$0x3]
    %v53 = vld [vmem:[%s3 + $0x2] sm:$0x3]
    %v54 = vld [vmem:[%s3 + $0x4] sm:$0x3]
    %v55 = vld [vmem:[%s3 + $0x6] sm:$0x3]
    %vm56 = vcmask 343040
    %v57 = vsel %vm56, %v18, -inf
    %58 = vmax.xlane.f32.xlu0 %v57
    %v59 = vpop.xlane.xlu0 %58
    %v60 = vsel %vm56, %v19, -inf
    %61 = vmax.xlane.f32.xlu0 %v60
    %v62 = vpop.xlane.xlu0 %61
    %v63 = vsel %vm56, %v20, -inf
    %64 = vmax.xlane.f32.xlu0 %v63
    %v65 = vpop.xlane.xlu0 %64
    %v66 = vsel %vm56, %v21, -inf
    %67 = vmax.xlane.f32.xlu0 %v66
    %v68 = vpop.xlane.xlu0 %67
    %vm69 = vcmask 338944
    %v70 = vsel %vm69, %v22, -inf
    %71 = vmax.xlane.f32.xlu0 %v70
    %v72 = vpop.xlane.xlu0 %71
    %v73 = vsel %vm56, %v23, -inf
    %74 = vmax.xlane.f32.xlu0 %v73
    %v75 = vpop.xlane.xlu0 %74
    %v76 = vsel %vm56, %v24, -inf
    %77 = vmax.xlane.f32.xlu0 %v76
    %v78 = vpop.xlane.xlu0 %77
    %v79 = vsel %vm56, %v25, -inf
    %80 = vmax.xlane.f32.xlu0 %v79
    %v81 = vpop.xlane.xlu0 %80
    %v82 = vsel %vm56, %v26, -inf
    %83 = vmax.xlane.f32.xlu0 %v82
    %v84 = vpop.xlane.xlu0 %83
    %v85 = vsel %vm69, %v27, -inf
    %86 = vmax.xlane.f32.xlu0 %v85
    %v87 = vpop.xlane.xlu0 %86
    %v88 = vsub.f32 %v18, %v59
    %v89 = vsub.f32 %v19, %v62
    %v90 = vsub.f32 %v20, %v65
    %v91 = vsub.f32 %v21, %v68
    %v92 = vsub.f32 %v22, %v72
    %v93 = vsub.f32 %v23, %v75
    %v94 = vsub.f32 %v24, %v78
    %v95 = vsub.f32 %v25, %v81
    %v96 = vsub.f32 %v26, %v84
    %v97 = vsub.f32 %v27, %v87
    %v98 = vmul.f32 %v88, 1.442695
    %v99 = vpow.pop %v98
    %v100 = vmul.f32 %v89, 1.442695
    %v101 = vpow.pop %v100
    %v102 = vmul.f32 %v90, 1.442695
    %v103 = vpow.pop %v102
    %v104 = vmul.f32 %v91, 1.442695
    %v105 = vpow.pop %v104
    %v106 = vmul.f32 %v92, 1.442695
    %v107 = vpow.pop %v106
    %v108 = vmul.f32 %v93, 1.442695
    %v109 = vpow.pop %v108
    %v110 = vmul.f32 %v94, 1.442695
    %v111 = vpow.pop %v110
    %v112 = vmul.f32 %v95, 1.442695
    %v113 = vpow.pop %v112
    %v114 = vmul.f32 %v96, 1.442695
    %v115 = vpow.pop %v114
    %v116 = vmul.f32 %v97, 1.442695
    %v117 = vpow.pop %v116
    %v118 = vsel %vm56, %v99, 0.0
    %119 = vadd.xlane.f32.xlu0 %v118
    %v120 = vpop.xlane.xlu0 %119
    %v121 = vsel %vm56, %v101, 0.0
    %122 = vadd.xlane.f32.xlu0 %v121
    %v123 = vpop.xlane.xlu0 %122
    %v124 = vsel %vm56, %v103, 0.0
    %125 = vadd.xlane.f32.xlu0 %v124
    %v126 = vpop.xlane.xlu0 %125
    %v127 = vsel %vm56, %v105, 0.0
    %128 = vadd.xlane.f32.xlu0 %v127
    %v129 = vpop.xlane.xlu0 %128
    %v130 = vsel %vm69, %v107, 0.0
    %131 = vadd.xlane.f32.xlu0 %v130
    %v132 = vpop.xlane.xlu0 %131
    %v133 = vsel %vm56, %v109, 0.0
    %134 = vadd.xlane.f32.xlu0 %v133
    %v135 = vpop.xlane.xlu0 %134
    %v136 = vsel %vm56, %v111, 0.0
    %137 = vadd.xlane.f32.xlu0 %v136
    %v138 = vpop.xlane.xlu0 %137
    %v139 = vsel %vm56, %v113, 0.0
    %140 = vadd.xlane.f32.xlu0 %v139
    %v141 = vpop.xlane.xlu0 %140
    %v142 = vsel %vm56, %v115, 0.0
    %143 = vadd.xlane.f32.xlu0 %v142
    %v144 = vpop.xlane.xlu0 %143
    %v145 = vsel %vm69, %v117, 0.0
    %146 = vadd.xlane.f32.xlu0 %v145
    %v147 = vpop.xlane.xlu0 %146
    %v148 = vmul.f32 %v99, %v42
    %v149 = vmul.f32 %v101, %v43
    %v150 = vmul.f32 %v103, %v44
    %v151 = vmul.f32 %v105, %v45
    %v152 = vmul.f32 %v107, %v46
    %v153 = vmul.f32 %v99, %v47
    %v154 = vmul.f32 %v101, %v48
    %v155 = vmul.f32 %v103, %v49
    %v156 = vmul.f32 %v105, %v50
    %v157 = vmul.f32 %v107, %v51
    %v158 = vmul.f32 %v109, %v42
    %v159 = vmul.f32 %v111, %v43
    %v160 = vmul.f32 %v113, %v44
    %v161 = vmul.f32 %v115, %v45
    %v162 = vmul.f32 %v117, %v46
    %v163 = vmul.f32 %v109, %v47
    %v164 = vmul.f32 %v111, %v48
    %v165 = vmul.f32 %v113, %v49
    %v166 = vmul.f32 %v115, %v50
    %v167 = vmul.f32 %v117, %v51
    %v168 = vsel %vm56, %v148, 0.0
    %169 = vadd.xlane.f32.xlu0 %v168
    %v170 = vpop.xlane.xlu0 %169
    %v171 = vsel %vm56, %v149, 0.0
    %172 = vadd.xlane.f32.xlu0 %v171
    %v173 = vpop.xlane.xlu0 %172
    %v174 = vsel %vm56, %v150, 0.0
    %175 = vadd.xlane.f32.xlu0 %v174
    %v176 = vpop.xlane.xlu0 %175
    %v177 = vsel %vm56, %v151, 0.0
    %178 = vadd.xlane.f32.xlu0 %v177
    %v179 = vpop.xlane.xlu0 %178
    %v180 = vsel %vm69, %v152, 0.0
    %181 = vadd.xlane.f32.xlu0 %v180
    %v182 = vpop.xlane.xlu0 %181
    %v183 = vsel %vm56, %v153, 0.0
    %184 = vadd.xlane.f32.xlu0 %v183
    %v185 = vpop.xlane.xlu0 %184
    %v186 = vsel %vm56, %v154, 0.0
    %187 = vadd.xlane.f32.xlu0 %v186
    %v188 = vpop.xlane.xlu0 %187
    %v189 = vsel %vm56, %v155, 0.0
    %190 = vadd.xlane.f32.xlu0 %v189
    %v191 = vpop.xlane.xlu0 %190
    %v192 = vsel %vm56, %v156, 0.0
    %193 = vadd.xlane.f32.xlu0 %v192
    %v194 = vpop.xlane.xlu0 %193
    %v195 = vsel %vm69, %v157, 0.0
    %196 = vadd.xlane.f32.xlu0 %v195
    %v197 = vpop.xlane.xlu0 %196
    %v198 = vsel %vm56, %v158, 0.0
    %199 = vadd.xlane.f32.xlu0 %v198
    %v200 = vpop.xlane.xlu0 %199
    %v201 = vsel %vm56, %v159, 0.0
    %202 = vadd.xlane.f32.xlu0 %v201
    %v203 = vpop.xlane.xlu0 %202
    %v204 = vsel %vm56, %v160, 0.0
    %205 = vadd.xlane.f32.xlu0 %v204
    %v206 = vpop.xlane.xlu0 %205
    %v207 = vsel %vm56, %v161, 0.0
    %208 = vadd.xlane.f32.xlu0 %v207
    %v209 = vpop.xlane.xlu0 %208
    %v210 = vsel %vm69, %v162, 0.0
    %211 = vadd.xlane.f32.xlu0 %v210
    %v212 = vpop.xlane.xlu0 %211
    %v213 = vsel %vm56, %v163, 0.0
    %214 = vadd.xlane.f32.xlu0 %v213
    %v215 = vpop.xlane.xlu0 %214
    %v216 = vsel %vm56, %v164, 0.0
    %217 = vadd.xlane.f32.xlu0 %v216
    %v218 = vpop.xlane.xlu0 %217
    %v219 = vsel %vm56, %v165, 0.0
    %220 = vadd.xlane.f32.xlu0 %v219
    %v221 = vpop.xlane.xlu0 %220
    %v222 = vsel %vm56, %v166, 0.0
    %223 = vadd.xlane.f32.xlu0 %v222
    %v224 = vpop.xlane.xlu0 %223
    %v225 = vsel %vm69, %v167, 0.0
    %226 = vadd.xlane.f32.xlu0 %v225
    %v227 = vpop.xlane.xlu0 %226
    %v228 = vrcp.pop %v120
    %v229 = vmul.f32 %v120, %v228
    %v230 = vsub.f32 1.0, %v229
    %v231 = vmul.f32 %v228, %v230
    %v232 = vadd.f32 %v228, %v231
    %vm233 = vweird.f32 %v120
    %vm234 = vweird.f32 %v228
    %vm235 = vmor %vm233, %vm234
    %v236 = vsel %vm235, %v228, %v232
    %v237 = vand.u32 2147483647, %v120
    %vm238 = vcmp.eq.f32.partialorder %v237, 8.507059e+37
    %v239 = vand.u32 %v120, 2147483648
    %v240 = vor.u32 1.1754944e-38, %v239
    %v241 = vsel %vm238, %v240, %v236
    %v242 = vmul.f32 %v170, %v241
    %v243 = vrcp.pop %v123
    %v244 = vmul.f32 %v123, %v243
    %v245 = vsub.f32 1.0, %v244
    %v246 = vmul.f32 %v243, %v245
    %v247 = vadd.f32 %v243, %v246
    %vm248 = vweird.f32 %v123
    %vm249 = vweird.f32 %v243
    %vm250 = vmor %vm248, %vm249
    %v251 = vsel %vm250, %v243, %v247
    %v252 = vand.u32 2147483647, %v123
    %vm253 = vcmp.eq.f32.partialorder %v252, 8.507059e+37
    %v254 = vand.u32 %v123, 2147483648
    %v255 = vor.u32 1.1754944e-38, %v254
    %v256 = vsel %vm253, %v255, %v251
    %v257 = vmul.f32 %v173, %v256
    %v258 = vrcp.pop %v126
    %v259 = vmul.f32 %v126, %v258
    %v260 = vsub.f32 1.0, %v259
    %v261 = vmul.f32 %v258, %v260
    %v262 = vadd.f32 %v258, %v261
    %vm263 = vweird.f32 %v126
    %vm264 = vweird.f32 %v258
    %vm265 = vmor %vm263, %vm264
    %v266 = vsel %vm265, %v258, %v262
    %v267 = vand.u32 2147483647, %v126
    %vm268 = vcmp.eq.f32.partialorder %v267, 8.507059e+37
    %v269 = vand.u32 %v126, 2147483648
    %v270 = vor.u32 1.1754944e-38, %v269
    %v271 = vsel %vm268, %v270, %v266
    %v272 = vmul.f32 %v176, %v271
    %v273 = vrcp.pop %v129
    %v274 = vmul.f32 %v129, %v273
    %v275 = vsub.f32 1.0, %v274
    %v276 = vmul.f32 %v273, %v275
    %v277 = vadd.f32 %v273, %v276
    %vm278 = vweird.f32 %v129
    %vm279 = vweird.f32 %v273
    %vm280 = vmor %vm278, %vm279
    %v281 = vsel %vm280, %v273, %v277
    %v282 = vand.u32 2147483647, %v129
    %vm283 = vcmp.eq.f32.partialorder %v282, 8.507059e+37
    %v284 = vand.u32 %v129, 2147483648
    %v285 = vor.u32 1.1754944e-38, %v284
    %v286 = vsel %vm283, %v285, %v281
    %v287 = vmul.f32 %v179, %v286
    %v288 = vrcp.pop %v132
    %v289 = vmul.f32 %v132, %v288
    %v290 = vsub.f32 1.0, %v289
    %v291 = vmul.f32 %v288, %v290
    %v292 = vadd.f32 %v288, %v291
    %vm293 = vweird.f32 %v132
    %vm294 = vweird.f32 %v288
    %vm295 = vmor %vm293, %vm294
    %v296 = vsel %vm295, %v288, %v292
    %v297 = vand.u32 2147483647, %v132
    %vm298 = vcmp.eq.f32.partialorder %v297, 8.507059e+37
    %v299 = vand.u32 %v132, 2147483648
    %v300 = vor.u32 1.1754944e-38, %v299
    %v301 = vsel %vm298, %v300, %v296
    %v302 = vmul.f32 %v182, %v301
    %v303 = vmul.f32 %v185, %v241
    %v304 = vmul.f32 %v188, %v256
    %v305 = vmul.f32 %v191, %v271
    %v306 = vmul.f32 %v194, %v286
    %v307 = vmul.f32 %v197, %v301
    %v308 = vrcp.pop %v135
    %v309 = vmul.f32 %v135, %v308
    %v310 = vsub.f32 1.0, %v309
    %v311 = vmul.f32 %v308, %v310
    %v312 = vadd.f32 %v308, %v311
    %vm313 = vweird.f32 %v135
    %vm314 = vweird.f32 %v308
    %vm315 = vmor %vm313, %vm314
    %v316 = vsel %vm315, %v308, %v312
    %v317 = vand.u32 2147483647, %v135
    %vm318 = vcmp.eq.f32.partialorder %v317, 8.507059e+37
    %v319 = vand.u32 %v135, 2147483648
    %v320 = vor.u32 1.1754944e-38, %v319
    %v321 = vsel %vm318, %v320, %v316
    %v322 = vmul.f32 %v200, %v321
    %v323 = vrcp.pop %v138
    %v324 = vmul.f32 %v138, %v323
    %v325 = vsub.f32 1.0, %v324
    %v326 = vmul.f32 %v323, %v325
    %v327 = vadd.f32 %v323, %v326
    %vm328 = vweird.f32 %v138
    %vm329 = vweird.f32 %v323
    %vm330 = vmor %vm328, %vm329
    %v331 = vsel %vm330, %v323, %v327
    %v332 = vand.u32 2147483647, %v138
    %vm333 = vcmp.eq.f32.partialorder %v332, 8.507059e+37
    %v334 = vand.u32 %v138, 2147483648
    %v335 = vor.u32 1.1754944e-38, %v334
    %v336 = vsel %vm333, %v335, %v331
    %v337 = vmul.f32 %v203, %v336
    %v338 = vrcp.pop %v141
    %v339 = vmul.f32 %v141, %v338
    %v340 = vsub.f32 1.0, %v339
    %v341 = vmul.f32 %v338, %v340
    %v342 = vadd.f32 %v338, %v341
    %vm343 = vweird.f32 %v141
    %vm344 = vweird.f32 %v338
    %vm345 = vmor %vm343, %vm344
    %v346 = vsel %vm345, %v338, %v342
    %v347 = vand.u32 2147483647, %v141
    %vm348 = vcmp.eq.f32.partialorder %v347, 8.507059e+37
    %v349 = vand.u32 %v141, 2147483648
    %v350 = vor.u32 1.1754944e-38, %v349
    %v351 = vsel %vm348, %v350, %v346
    %v352 = vmul.f32 %v206, %v351
    %v353 = vrcp.pop %v144
    %v354 = vmul.f32 %v144, %v353
    %v355 = vsub.f32 1.0, %v354
    %v356 = vmul.f32 %v353, %v355
    %v357 = vadd.f32 %v353, %v356
    %vm358 = vweird.f32 %v144
    %vm359 = vweird.f32 %v353
    %vm360 = vmor %vm358, %vm359
    %v361 = vsel %vm360, %v353, %v357
    %v362 = vand.u32 2147483647, %v144
    %vm363 = vcmp.eq.f32.partialorder %v362, 8.507059e+37
    %v364 = vand.u32 %v144, 2147483648
    %v365 = vor.u32 1.1754944e-38, %v364
    %v366 = vsel %vm363, %v365, %v361
    %v367 = vmul.f32 %v209, %v366
    %v368 = vrcp.pop %v147
    %v369 = vmul.f32 %v147, %v368
    %v370 = vsub.f32 1.0, %v369
    %v371 = vmul.f32 %v368, %v370
    %v372 = vadd.f32 %v368, %v371
    %vm373 = vweird.f32 %v147
    %vm374 = vweird.f32 %v368
    %vm375 = vmor %vm373, %vm374
    %v376 = vsel %vm375, %v368, %v372
    %v377 = vand.u32 2147483647, %v147
    %vm378 = vcmp.eq.f32.partialorder %v377, 8.507059e+37
    %v379 = vand.u32 %v147, 2147483648
    %v380 = vor.u32 1.1754944e-38, %v379
    %v381 = vsel %vm378, %v380, %v376
    %v382 = vmul.f32 %v212, %v381
    %v383 = vmul.f32 %v215, %v321
    %v384 = vmul.f32 %v218, %v336
    %v385 = vmul.f32 %v221, %v351
    %v386 = vmul.f32 %v224, %v366
    %v387 = vmul.f32 %v227, %v381
    %v408 = vlaneseq
    %v409 = vand.u32 %v408, 127
    %v410 = vperm.slane %v242, %v409
    %v411 = vadd.s32 %v409, 4294967288
    %v412 = vperm.slane %v257, %v411
    %vm413 = vcmask 130112
    %v414 = vsel %vm413, %v412, %v410
    %v415 = vadd.s32 %v409, 4294967280
    %v416 = vperm.slane %v272, %v415
    %vm417 = vcmask 195712
    %v418 = vsel %vm417, %v416, %v414
    %v419 = vadd.s32 %v409, 4294967272
    %v420 = vperm.slane %v287, %v419
    %vm421 = vcmask 261312
    %v422 = vsel %vm421, %v420, %v418
    %v423 = vadd.s32 %v409, 4294967264
    %v424 = vperm.slane %v302, %v423
    %vm425 = vcmask 326912
    %v426 = vsel %vm425, %v424, %v422
    %v427 = vperm.slane %v303, %v409
    %v428 = vperm.slane %v304, %v411
    %v429 = vsel %vm413, %v428, %v427
    %v430 = vperm.slane %v305, %v415
    %v431 = vsel %vm417, %v430, %v429
    %v432 = vperm.slane %v306, %v419
    %v433 = vsel %vm421, %v432, %v431
    %v434 = vperm.slane %v307, %v423
    %v435 = vsel %vm425, %v434, %v433
    %v436 = vperm.slane %v322, %v409
    %v437 = vperm.slane %v337, %v411
    %v438 = vsel %vm413, %v437, %v436
    %v439 = vperm.slane %v352, %v415
    %v440 = vsel %vm417, %v439, %v438
    %v441 = vperm.slane %v367, %v419
    %v442 = vsel %vm421, %v441, %v440
    %v443 = vperm.slane %v382, %v423
    %v444 = vsel %vm425, %v443, %v442
    %v445 = vperm.slane %v383, %v409
    %v446 = vperm.slane %v384, %v411
    %v447 = vsel %vm413, %v446, %v445
    %v448 = vperm.slane %v385, %v415
    %v449 = vsel %vm417, %v448, %v447
    %v450 = vperm.slane %v386, %v419
    %v451 = vsel %vm421, %v450, %v449
    %v452 = vperm.slane %v387, %v423
    %v453 = vsel %vm425, %v452, %v451
    %vm454 = vcmask 1041409
    %v455 = vsel %vm454, %v435, %v426
    %v456 = vsel %vm454, %v453, %v444
    %vm459 = vcmask 287744
    %v460 = vsel %vm459, %v455, 0.0
    %461 = vadd.xlane.f32.xlu0 %v460
    %v462 = vpop.xlane.xlu0 %461
    %v463 = vsel %vm459, %v456, 0.0
    %464 = vadd.xlane.f32.xlu0 %v463
    %v465 = vpop.xlane.xlu0 %464
    %v466 = vrcp.pop 36.0
    %v467 = vmul.f32 36.0, %v466
    %v468 = vsub.f32 1.0, %v467
    %v469 = vmul.f32 %v466, %v468
    %v470 = vadd.f32 %v466, %v469
    %vm471 = vweird.f32 %v466
    %v472 = vsel %vm471, %v466, %v470
    %v473 = vmul.f32 %v462, %v472
    %v474 = vmul.f32 %v465, %v472
    %v475 = vsub.f32 0.0, %v473
    %v476 = vsub.f32 0.0, %v474
    %v477 = vmul.f32 %v30, 0.5
    %v478 = vsub.f32 %v28, %v477
    %v479 = vmul.f32 %v31, 0.5
    %v480 = vsub.f32 %v29, %v479
    %v481 = vadd.f32 %v28, %v477
    %v482 = vadd.f32 %v29, %v479
    %v483 = vmul.f32 %v54, 0.5
    %v484 = vsub.f32 %v52, %v483
    %v485 = vmul.f32 %v55, 0.5
    %v486 = vsub.f32 %v53, %v485
    %v487 = vadd.f32 %v52, %v483
    %v488 = vadd.f32 %v53, %v485
    %v489 = vsub.f32 %v481, %v478
    %v490 = vsub.f32 %v482, %v480
    %v491 = vmul.f32 %v489, %v490
    %v492 = vsub.f32 %v487, %v484
    %v493 = vsub.f32 %v488, %v486
    %v494 = vmul.f32 %v492, %v493
    %v496 = vrot.slane %v28, 1
    %v497 = vperm.slane %v28, 0
    %v498 = vperm.slane %v496, 0
    %v501 = vsub.f32 %v497, %v52
    %v502 = vsub.f32 %v498, %v52
    %v503 = vand.u32 2147483647, %v501
    %v504 = vand.u32 2147483647, %v502
    %v506 = vrot.slane %v29, 1
    %v507 = vperm.slane %v29, 0
    %v508 = vperm.slane %v506, 0
    %v511 = vsub.f32 %v507, %v53
    %v512 = vsub.f32 %v508, %v53
    %v513 = vand.u32 2147483647, %v511
    %v514 = vand.u32 2147483647, %v512
    %v515 = vadd.f32 %v503, %v513
    %v516 = vadd.f32 %v504, %v514
    %v518 = vrot.slane %v30, 1
    %v519 = vperm.slane %v30, 0
    %v520 = vperm.slane %v518, 0
    %v523 = vsub.f32 %v519, %v54
    %v524 = vsub.f32 %v520, %v54
    %v525 = vand.u32 2147483647, %v523
    %v526 = vand.u32 2147483647, %v524
    %v527 = vadd.f32 %v515, %v525
    %v528 = vadd.f32 %v516, %v526
    %v530 = vrot.slane %v31, 1
    %v531 = vperm.slane %v31, 0
    %v532 = vperm.slane %v530, 0
    %v535 = vsub.f32 %v531, %v55
    %v536 = vsub.f32 %v532, %v55
    %v537 = vand.u32 2147483647, %v535
    %v538 = vand.u32 2147483647, %v536
    %v539 = vadd.f32 %v527, %v537
    %v540 = vadd.f32 %v528, %v538
    %v541 = vsel %vm459, %v539, 0.0
    %542 = vadd.xlane.f32.xlu0 %v541
    %v543 = vpop.xlane.xlu0 %542
    %v544 = vsel %vm459, %v540, 0.0
    %545 = vadd.xlane.f32.xlu0 %v544
    %v546 = vpop.xlane.xlu0 %545
    %v547 = vmul.f32 %v543, 0.0069444445
    %v548 = vmul.f32 %v546, 0.0069444445
    %v550 = vrot.slane %v478, 1
    %v552 = vrot.slane %v480, 1
    %v554 = vrot.slane %v481, 1
    %v556 = vrot.slane %v482, 1
    %v557 = vperm.slane %v481, 0
    %v558 = vperm.slane %v554, 0
    %v561 = vmin.f32 %v557, %v487
    %v562 = vmin.f32 %v558, %v487
    %v563 = vperm.slane %v478, 0
    %v564 = vperm.slane %v550, 0
    %v567 = vmax.f32 %v563, %v484
    %v568 = vmax.f32 %v564, %v484
    %v569 = vsub.f32 %v561, %v567
    %v570 = vsub.f32 %v562, %v568
    %v571 = vmax.f32 %v569, 0.0
    %v572 = vmax.f32 %v570, 0.0
    %v573 = vperm.slane %v482, 0
    %v574 = vperm.slane %v556, 0
    %v577 = vmin.f32 %v573, %v488
    %v578 = vmin.f32 %v574, %v488
    %v579 = vperm.slane %v480, 0
    %v580 = vperm.slane %v552, 0
    %v583 = vmax.f32 %v579, %v486
    %v584 = vmax.f32 %v580, %v486
    %v585 = vsub.f32 %v577, %v583
    %v586 = vsub.f32 %v578, %v584
    %v587 = vmax.f32 %v585, 0.0
    %v588 = vmax.f32 %v586, 0.0
    %v589 = vmul.f32 %v571, %v587
    %v590 = vmul.f32 %v572, %v588
    %v592 = vrot.slane %v491, 1
    %v593 = vperm.slane %v491, 0
    %v594 = vperm.slane %v592, 0
    %v597 = vadd.f32 %v593, %v494
    %v598 = vadd.f32 %v594, %v494
    %v599 = vsub.f32 %v597, %v589
    %v600 = vsub.f32 %v598, %v590
    %v601 = vrcp.pop %v599
    %v602 = vmul.f32 %v599, %v601
    %v603 = vsub.f32 1.0, %v602
    %v604 = vmul.f32 %v601, %v603
    %v605 = vadd.f32 %v601, %v604
    %vm606 = vweird.f32 %v599
    %vm607 = vweird.f32 %v601
    %vm608 = vmor %vm606, %vm607
    %v609 = vsel %vm608, %v601, %v605
    %v610 = vand.u32 2147483647, %v599
    %vm611 = vcmp.eq.f32.partialorder %v610, 8.507059e+37
    %v612 = vand.u32 %v599, 2147483648
    %v613 = vor.u32 1.1754944e-38, %v612
    %v614 = vsel %vm611, %v613, %v609
    %v615 = vmul.f32 %v589, %v614
    %v616 = vrcp.pop %v600
    %v617 = vmul.f32 %v600, %v616
    %v618 = vsub.f32 1.0, %v617
    %v619 = vmul.f32 %v616, %v618
    %v620 = vadd.f32 %v616, %v619
    %vm621 = vweird.f32 %v600
    %vm622 = vweird.f32 %v616
    %vm623 = vmor %vm621, %vm622
    %v624 = vsel %vm623, %v616, %v620
    %v625 = vand.u32 2147483647, %v600
    %vm626 = vcmp.eq.f32.partialorder %v625, 8.507059e+37
    %v627 = vand.u32 %v600, 2147483648
    %v628 = vor.u32 1.1754944e-38, %v627
    %v629 = vsel %vm626, %v628, %v624
    %v630 = vmul.f32 %v590, %v629
    %v631 = vmax.f32 %v557, %v487
    %v632 = vmax.f32 %v558, %v487
    %v633 = vmin.f32 %v563, %v484
    %v634 = vmin.f32 %v564, %v484
    %v635 = vsub.f32 %v631, %v633
    %v636 = vsub.f32 %v632, %v634
    %v637 = vmax.f32 %v635, 0.0
    %v638 = vmax.f32 %v636, 0.0
    %v639 = vmax.f32 %v573, %v488
    %v640 = vmax.f32 %v574, %v488
    %v641 = vmin.f32 %v579, %v486
    %v642 = vmin.f32 %v580, %v486
    %v643 = vsub.f32 %v639, %v641
    %v644 = vsub.f32 %v640, %v642
    %v645 = vmax.f32 %v643, 0.0
    %v646 = vmax.f32 %v644, 0.0
    %v647 = vmul.f32 %v637, %v645
    %v648 = vmul.f32 %v638, %v646
    %v649 = vsub.f32 %v647, %v599
    %v650 = vsub.f32 %v648, %v600
    %v651 = vrcp.pop %v647
    %v652 = vmul.f32 %v647, %v651
    %v653 = vsub.f32 1.0, %v652
    %v654 = vmul.f32 %v651, %v653
    %v655 = vadd.f32 %v651, %v654
    %vm656 = vweird.f32 %v647
    %vm657 = vweird.f32 %v651
    %vm658 = vmor %vm656, %vm657
    %v659 = vsel %vm658, %v651, %v655
    %v660 = vand.u32 2147483647, %v647
    %vm661 = vcmp.eq.f32.partialorder %v660, 8.507059e+37
    %v662 = vand.u32 %v647, 2147483648
    %v663 = vor.u32 1.1754944e-38, %v662
    %v664 = vsel %vm661, %v663, %v659
    %v665 = vmul.f32 %v649, %v664
    %v666 = vrcp.pop %v648
    %v667 = vmul.f32 %v648, %v666
    %v668 = vsub.f32 1.0, %v667
    %v669 = vmul.f32 %v666, %v668
    %v670 = vadd.f32 %v666, %v669
    %vm671 = vweird.f32 %v648
    %vm672 = vweird.f32 %v666
    %vm673 = vmor %vm671, %vm672
    %v674 = vsel %vm673, %v666, %v670
    %v675 = vand.u32 2147483647, %v648
    %vm676 = vcmp.eq.f32.partialorder %v675, 8.507059e+37
    %v677 = vand.u32 %v648, 2147483648
    %v678 = vor.u32 1.1754944e-38, %v677
    %v679 = vsel %vm676, %v678, %v674
    %v680 = vmul.f32 %v650, %v679
    %v681 = vsub.f32 %v615, %v665
    %v682 = vsub.f32 %v630, %v680
    %v683 = vsel %vm459, %v681, 0.0
    %684 = vadd.xlane.f32.xlu0 %v683
    %v685 = vpop.xlane.xlu0 %684
    %v686 = vsel %vm459, %v682, 0.0
    %687 = vadd.xlane.f32.xlu0 %v686
    %v688 = vpop.xlane.xlu0 %687
    %v689 = vmul.f32 %v685, %v472
    %v690 = vmul.f32 %v688, %v472
    %v691 = vsub.f32 0.0, %v689
    %v692 = vsub.f32 0.0, %v690
    %v693 = vadd.f32 %v475, %v547
    %v694 = vadd.f32 %v476, %v548
    %v695 = vadd.f32 %v693, %v691
    %v696 = vadd.f32 %v694, %v692
    %v699 = vperm.slane %v695, %v409
    %v700 = vperm.slane %v696, %v409
    %v701 = vsel %vm454, %v700, %v699
    %vm703 = vcmask 9216
    %704 = vst.msk [vmem:[#allocation2] sm:$0x3] %vm703, %v701
    // Predicated region
    $region18: #{tpu_custom_call.1} parent=1 // pred_check
      _
    $region19: #{tpu_custom_call.1} parent=1 // pred_check_branch
      %706 = sbr.rel (0) target = $region21
    $region20: #{tpu_custom_call.1} parent=1 // pred_region
      %708 = vsyncadd [#allocation3], 0
      %s710 = sshll.u32 [#allocation2], 4
      %s711 = int_to_ptr.vmem [resolvable:$true] %s710
      %s712 = sshll.u32 %s4, 4
      %s713 = int_to_ptr.hbm [resolvable:$true] %s712
      %715 = dma.vmem_to_hbm [thread:$0]  %s711, 32, %s713, [#allocation3]
    $region21: #{tpu_custom_call.1} parent=1 // pred_fallthru
      _
    // Predicated region
    $region22: #{tpu_custom_call.1} parent=1 // pred_check
      _
    $region23: #{tpu_custom_call.1} parent=1 // pred_check_branch
      %717 = sbr.rel (0) target = $region25
    $region24: #{tpu_custom_call.1} parent=1 // pred_region
      %719 = dma.done [#allocation3], 32
    $region25: #{tpu_custom_call.1} parent=1 // pred_fallthru
      _
    %720 = vsyncpa [#allocation3], 1

</llo_original>
